<compile_context>
chip_gen: v6e
topology: v6e:2x2x1
jax: 0.10.0
libtpu: 0.0.40
codegen_flags: <defaults>
</compile_context>

<pallas_src>
import functools

import jax
import jax.numpy as jnp
from jax.experimental import pallas as pl
from jax.experimental.pallas import tpu as pltpu

# Model hyperparameters (consistent with the module's __init__).
INPUT_DIM = 16
NUM_UNITS = 128
OUTPUT_DIM = 8
DROP_PROB = 0.25

# Default batch tile (rows per grid step).  512 keeps per-tile VMEM ~1 MiB-ish
# incl. intermediates, comfortably inside every chip's scoped VMEM default while
# amortizing the per-grid-step overhead and giving the MXU a decent M dim.
DEFAULT_TILE_B = 512


def _round_up(n, m):
    return ((n + m - 1) // m) * m


def _mc_dropout_kernel(x_ref, bits_ref,                 # streamed per batch tile
                       w1_ref, b1_ref, w2_ref, b2_ref,  # resident params
                       w3_ref, b3_ref,
                       o_ref,                           # streamed output tile
                       *, drop_threshold, keep_scale):
    x = x_ref[...]                                      # (TILE_B, INPUT_DIM) f32

    # ---- layer1 + ReLU ---------------------------------------------------
    h1 = jnp.dot(x, w1_ref[...], preferred_element_type=jnp.float32)
    h1 = jnp.maximum(h1 + b1_ref[...], 0.0)

    # ---- MC dropout (training=True, inverted scaling) ----------------------
    # keep with prob (1 - p):  P(bits >= p * 2^32) = 1 - p
    keep = bits_ref[...] >= jnp.uint32(drop_threshold)
    h1 = jnp.where(keep, h1 * jnp.float32(keep_scale), jnp.float32(0.0))

    # ---- layer2 + ReLU ----------------------------------------------------
    h2 = jnp.dot(h1, w2_ref[...], preferred_element_type=jnp.float32)
    h2 = jnp.maximum(h2 + b2_ref[...], 0.0)

    # ---- layer3 (no activation) --------------------------------------------
    out = jnp.dot(h2, w3_ref[...], preferred_element_type=jnp.float32)
    o_ref[...] = (out + b3_ref[...]).astype(o_ref.dtype)


def mc_dropout_forward(x, params, key, *, drop_prob=DROP_PROB,
                       tile_b=DEFAULT_TILE_B):
    """Forward pass of MC_Dropout_Model.

    x      : any shape whose flatten gives (-1, INPUT_DIM)   (PyTorch x.view)
    params : dict with w1,b1,w2,b2,w3,b3 (weights stored (in, out))
    key    : jax PRNG key controlling the dropout mask (MC sample index)
    """
    x2 = x.reshape(-1, INPUT_DIM).astype(jnp.float32)
    B = x2.shape[0]

    # Dropout random bits, generated for exactly B rows (reference-matchable),
    # then padded together with x to the tile boundary.
    bits = jax.random.bits(key, (B, NUM_UNITS), dtype=jnp.uint32)

    tile_b = min(tile_b, _round_up(B, 8))     # small batches: one small tile
    Bp = _round_up(B, tile_b)
    if Bp != B:
        x2 = jnp.pad(x2, ((0, Bp - B), (0, 0)))
        bits = jnp.pad(bits, ((0, Bp - B), (0, 0)))
    grid = (Bp // tile_b,)

    b1 = params["b1"].reshape(1, NUM_UNITS).astype(jnp.float32)
    b2 = params["b2"].reshape(1, NUM_UNITS).astype(jnp.float32)
    b3 = params["b3"].reshape(1, OUTPUT_DIM).astype(jnp.float32)

    drop_threshold = min(int(round(drop_prob * (1 << 32))), (1 << 32) - 1)
    keep_scale = 1.0 / (1.0 - drop_prob)

    kernel = functools.partial(_mc_dropout_kernel,
                               drop_threshold=drop_threshold,
                               keep_scale=keep_scale)

    in_specs = [
        # streamed per batch tile
        pl.BlockSpec((tile_b, INPUT_DIM), lambda i: (i, 0)),
        pl.BlockSpec((tile_b, NUM_UNITS), lambda i: (i, 0)),
        # resident parameters (constant index_map -> DMA'd once)
        pl.BlockSpec((INPUT_DIM, NUM_UNITS), lambda i: (0, 0)),
        pl.BlockSpec((1, NUM_UNITS), lambda i: (0, 0)),
        pl.BlockSpec((NUM_UNITS, NUM_UNITS), lambda i: (0, 0)),
        pl.BlockSpec((1, NUM_UNITS), lambda i: (0, 0)),
        pl.BlockSpec((NUM_UNITS, OUTPUT_DIM), lambda i: (0, 0)),
        pl.BlockSpec((1, OUTPUT_DIM), lambda i: (0, 0)),
    ]
    out_specs = pl.BlockSpec((tile_b, OUTPUT_DIM), lambda i: (i, 0))

    out = pl.pallas_call(
        kernel,
        out_shape=jax.ShapeDtypeStruct((Bp, OUTPUT_DIM), jnp.float32),
        grid=grid,
        in_specs=in_specs,
        out_specs=out_specs,
        compiler_params=pltpu.CompilerParams(
            dimension_semantics=("parallel",)),   # megacore sharding on v7x
    )(x2, bits, params["w1"], b1, params["w2"], b2, params["w3"], b3)

    return out[:B]


def reference_forward(x, params, key, *, drop_prob=DROP_PROB):
    """Pure-JAX reference with the identical dropout mask (same key / bits)."""
    x2 = x.reshape(-1, INPUT_DIM).astype(jnp.float32)
    B = x2.shape[0]
    h1 = jnp.maximum(x2 @ params["w1"] + params["b1"], 0.0)
    bits = jax.random.bits(key, (B, NUM_UNITS), dtype=jnp.uint32)
    thr = jnp.uint32(min(int(round(drop_prob * (1 << 32))), (1 << 32) - 1))
    keep = bits >= thr
    h1 = jnp.where(keep, h1 / (1.0 - drop_prob), 0.0)
    h2 = jnp.maximum(h1 @ params["w2"] + params["b2"], 0.0)
    return h2 @ params["w3"] + params["b3"]


def init_params(key):
    """Deterministic init mimicking nn.Linear; weights stored (in, out)."""
    k1, k2, k3, k4, k5, k6 = jax.random.split(key, 6)

    def unif(k, shape, fan_in):
        bound = 1.0 / jnp.sqrt(fan_in)
        return jax.random.uniform(k, shape, jnp.float32, -bound, bound)

    return {
        "w1": unif(k1, (INPUT_DIM, NUM_UNITS), INPUT_DIM),
        "b1": unif(k2, (NUM_UNITS,), INPUT_DIM),
        "w2": unif(k3, (NUM_UNITS, NUM_UNITS), NUM_UNITS),
        "b2": unif(k4, (NUM_UNITS,), NUM_UNITS),
        "w3": unif(k5, (NUM_UNITS, OUTPUT_DIM), NUM_UNITS),
        "b3": unif(k6, (OUTPUT_DIM,), NUM_UNITS),
    }


if __name__ == "__main__":
    key = jax.random.PRNGKey(0)
    pkey, xkey, dkey = jax.random.split(key, 3)

    params = init_params(pkey)

    # Example input: (2, 8, 16) -> view(-1, 16) gives a (16, 16) batch.
    x = jax.random.normal(xkey, (2, 8, INPUT_DIM), dtype=jnp.float32)

    # Small tile to exercise a multi-step batch grid even at this tiny size.
    out = mc_dropout_forward(x, params, dkey, tile_b=8)
    out = jax.block_until_ready(out)

    assert out.shape == (16, OUTPUT_DIM), out.shape
    assert bool(jnp.all(jnp.isfinite(out)))

    ref = reference_forward(x, params, dkey)
    assert bool(jnp.allclose(out, ref, atol=1e-5, rtol=1e-5)), (
        float(jnp.max(jnp.abs(out - ref))))

    print("KERNEL_OK")
</pallas_src>

<mosaic_0001>
module attributes {stable_mosaic.version = 11 : i64} {
  func.func @_mc_dropout_kernel(%arg0: i32, %arg1: memref<8x16xf32, #tpu.memory_space<vmem>>, %arg2: memref<8x128xi32, #tpu.memory_space<vmem>>, %arg3: memref<16x128xf32, #tpu.memory_space<vmem>>, %arg4: memref<1x128xf32, #tpu.memory_space<vmem>>, %arg5: memref<128x128xf32, #tpu.memory_space<vmem>>, %arg6: memref<1x128xf32, #tpu.memory_space<vmem>>, %arg7: memref<128x8xf32, #tpu.memory_space<vmem>>, %arg8: memref<1x8xf32, #tpu.memory_space<vmem>>, %arg9: memref<8x8xf32, #tpu.memory_space<vmem>>) attributes {dimension_semantics = [#tpu.dimension_semantics<parallel>], iteration_bounds = array<i64: 2>, scalar_prefetch = 0 : i64, scratch_operands = 0 : i64, tpu.core_type = #tpu.core_type<tc>, window_params = [{transform_indices = @transform_0, window_bounds = array<i64: 8, 16>}, {transform_indices = @transform_1, window_bounds = array<i64: 8, 128>}, {pipeline_mode = #tpu.pipeline_mode<synchronous>, transform_indices = @transform_2, window_bounds = array<i64: 16, 128>}, {pipeline_mode = #tpu.pipeline_mode<synchronous>, transform_indices = @transform_3, window_bounds = array<i64: 1, 128>}, {pipeline_mode = #tpu.pipeline_mode<synchronous>, transform_indices = @transform_4, window_bounds = array<i64: 128, 128>}, {pipeline_mode = #tpu.pipeline_mode<synchronous>, transform_indices = @transform_5, window_bounds = array<i64: 1, 128>}, {pipeline_mode = #tpu.pipeline_mode<synchronous>, transform_indices = @transform_6, window_bounds = array<i64: 128, 8>}, {pipeline_mode = #tpu.pipeline_mode<synchronous>, transform_indices = @transform_7, window_bounds = array<i64: 1, 8>}, {transform_indices = @transform_8, window_bounds = array<i64: 8, 8>}]} {
    %c0 = arith.constant 0 : index
    %c0_0 = arith.constant 0 : index
    %0 = vector.load %arg1[%c0, %c0_0] : memref<8x16xf32, #tpu.memory_space<vmem>>, vector<8x16xf32>
    %c0_1 = arith.constant 0 : index
    %c0_2 = arith.constant 0 : index
    %1 = vector.load %arg3[%c0_1, %c0_2] : memref<16x128xf32, #tpu.memory_space<vmem>>, vector<16x128xf32>
    %cst = arith.constant dense<0.000000e+00> : vector<8x128xf32>
    %2 = tpu.matmul %0, %1, %cst {dimension_numbers = #tpu.dot_dimension_numbers<[1], [0], [0], [1], [0, 0, 1, 1], [], []>} : vector<8x16xf32>, vector<16x128xf32>, vector<8x128xf32> -> vector<8x128xf32>
    %c0_3 = arith.constant 0 : index
    %c0_4 = arith.constant 0 : index
    %3 = vector.load %arg4[%c0_3, %c0_4] : memref<1x128xf32, #tpu.memory_space<vmem>>, vector<1x128xf32>
    %4 = vector.broadcast %3 : vector<1x128xf32> to vector<8x128xf32>
    %5 = arith.addf %2, %4 : vector<8x128xf32>
    %cst_5 = arith.constant 0.000000e+00 : f32
    %6 = vector.broadcast %cst_5 : f32 to vector<8x128xf32>
    %7 = arith.maximumf %5, %6 : vector<8x128xf32>
    %c0_6 = arith.constant 0 : index
    %c0_7 = arith.constant 0 : index
    %8 = vector.load %arg2[%c0_6, %c0_7] : memref<8x128xi32, #tpu.memory_space<vmem>>, vector<8x128xi32>
    %c1073741824_i32 = arith.constant 1073741824 : i32
    %9 = vector.broadcast %c1073741824_i32 : i32 to vector<8x128xi32>
    %10 = arith.cmpi uge, %8, %9 : vector<8x128xi32>
    %cst_8 = arith.constant 1.33333337 : f32
    %11 = vector.broadcast %cst_8 : f32 to vector<8x128xf32>
    %12 = arith.mulf %7, %11 : vector<8x128xf32>
    %cst_9 = arith.constant 0.000000e+00 : f32
    %13 = vector.broadcast %cst_9 : f32 to vector<8x128xf32>
    %14 = arith.select %10, %12, %13 : vector<8x128xi1>, vector<8x128xf32>
    %c0_10 = arith.constant 0 : index
    %c0_11 = arith.constant 0 : index
    %15 = vector.load %arg5[%c0_10, %c0_11] : memref<128x128xf32, #tpu.memory_space<vmem>>, vector<128x128xf32>
    %cst_12 = arith.constant dense<0.000000e+00> : vector<8x128xf32>
    %16 = tpu.matmul %14, %15, %cst_12 {dimension_numbers = #tpu.dot_dimension_numbers<[1], [0], [0], [1], [0, 0, 1, 1], [], []>} : vector<8x128xf32>, vector<128x128xf32>, vector<8x128xf32> -> vector<8x128xf32>
    %c0_13 = arith.constant 0 : index
    %c0_14 = arith.constant 0 : index
    %17 = vector.load %arg6[%c0_13, %c0_14] : memref<1x128xf32, #tpu.memory_space<vmem>>, vector<1x128xf32>
    %18 = vector.broadcast %17 : vector<1x128xf32> to vector<8x128xf32>
    %19 = arith.addf %16, %18 : vector<8x128xf32>
    %cst_15 = arith.constant 0.000000e+00 : f32
    %20 = vector.broadcast %cst_15 : f32 to vector<8x128xf32>
    %21 = arith.maximumf %19, %20 : vector<8x128xf32>
    %c0_16 = arith.constant 0 : index
    %c0_17 = arith.constant 0 : index
    %22 = vector.load %arg7[%c0_16, %c0_17] : memref<128x8xf32, #tpu.memory_space<vmem>>, vector<128x8xf32>
    %cst_18 = arith.constant dense<0.000000e+00> : vector<8x8xf32>
    %23 = tpu.matmul %21, %22, %cst_18 {dimension_numbers = #tpu.dot_dimension_numbers<[1], [0], [0], [1], [0, 0, 1, 1], [], []>} : vector<8x128xf32>, vector<128x8xf32>, vector<8x8xf32> -> vector<8x8xf32>
    %c0_19 = arith.constant 0 : index
    %c0_20 = arith.constant 0 : index
    %24 = vector.load %arg8[%c0_19, %c0_20] : memref<1x8xf32, #tpu.memory_space<vmem>>, vector<1x8xf32>
    %25 = vector.broadcast %24 : vector<1x8xf32> to vector<8x8xf32>
    %26 = arith.addf %23, %25 : vector<8x8xf32>
    %c0_21 = arith.constant 0 : index
    %c0_22 = arith.constant 0 : index
    %27 = vector.load %arg9[%c0_21, %c0_22] : memref<8x8xf32, #tpu.memory_space<vmem>>, vector<8x8xf32>
    tpu.vector_store %arg9[%c0_21, %c0_22], %26 {strides = array<i32>} : memref<8x8xf32, #tpu.memory_space<vmem>>, vector<8x8xf32>,
    return
  }
  func.func @transform_0(%arg0: i32) -> (i32, i32) {
    %c0_i32 = arith.constant 0 : i32
    %c0_i32_0 = arith.constant 0 : i32
    return %arg0, %c0_i32 : i32, i32
  }
  func.func @transform_1(%arg0: i32) -> (i32, i32) {
    %c0_i32 = arith.constant 0 : i32
    %c0_i32_0 = arith.constant 0 : i32
    return %arg0, %c0_i32 : i32, i32
  }
  func.func @transform_2(%arg0: i32) -> (i32, i32) {
    %c0_i32 = arith.constant 0 : i32
    %c0_i32_0 = arith.constant 0 : i32
    %c0_i32_1 = arith.constant 0 : i32
    return %c0_i32, %c0_i32_0 : i32, i32
  }
  func.func @transform_3(%arg0: i32) -> (i32, i32) {
    %c0_i32 = arith.constant 0 : i32
    %c0_i32_0 = arith.constant 0 : i32
    %c0_i32_1 = arith.constant 0 : i32
    return %c0_i32, %c0_i32_0 : i32, i32
  }
  func.func @transform_4(%arg0: i32) -> (i32, i32) {
    %c0_i32 = arith.constant 0 : i32
    %c0_i32_0 = arith.constant 0 : i32
    %c0_i32_1 = arith.constant 0 : i32
    return %c0_i32, %c0_i32_0 : i32, i32
  }
  func.func @transform_5(%arg0: i32) -> (i32, i32) {
    %c0_i32 = arith.constant 0 : i32
    %c0_i32_0 = arith.constant 0 : i32
    %c0_i32_1 = arith.constant 0 : i32
    return %c0_i32, %c0_i32_0 : i32, i32
  }
  func.func @transform_6(%arg0: i32) -> (i32, i32) {
    %c0_i32 = arith.constant 0 : i32
    %c0_i32_0 = arith.constant 0 : i32
    %c0_i32_1 = arith.constant 0 : i32
    return %c0_i32, %c0_i32_0 : i32, i32
  }
  func.func @transform_7(%arg0: i32) -> (i32, i32) {
    %c0_i32 = arith.constant 0 : i32
    %c0_i32_0 = arith.constant 0 : i32
    %c0_i32_1 = arith.constant 0 : i32
    return %c0_i32, %c0_i32_0 : i32, i32
  }
  func.func @transform_8(%arg0: i32) -> (i32, i32) {
    %c0_i32 = arith.constant 0 : i32
    %c0_i32_0 = arith.constant 0 : i32
    return %arg0, %c0_i32 : i32, i32
  }
}

</mosaic_0001>

<llo_original>
// kernel: tpu_custom_call.1
$region0: #{tpu_custom_call.1}
  #allocation0 [shape = 'u32[]', space=smem, size = 0x4, offset = 0x4, fixed_abs, tag = 'smem constant byte address 0x4 - core index']
  #allocation1 [shape = 'u32[144,128]{1,0:T(1,128)}', space=vmem, size = 0x12000, scoped, tag = 'internal scratch']
  %s0 = inlined_call_operand.hbm [shape: f32[16,16], index: 0, kind: input, shape index: {}]
  %s1 = inlined_call_operand.hbm [shape: u32[16,128], index: 1, kind: input, shape index: {}]
  %s2 = inlined_call_operand.hbm [shape: f32[16,128], index: 2, kind: input, shape index: {}]
  %s3 = inlined_call_operand.vmem [shape: f32[1,128], index: 3, kind: input, shape index: {}]
  %s4 = inlined_call_operand.vmem [shape: f32[128,128], index: 4, kind: input, shape index: {}]
  %s5 = inlined_call_operand.vmem [shape: f32[1,128], index: 5, kind: input, shape index: {}]
  %s6 = inlined_call_operand.vmem [shape: f32[128,8], index: 6, kind: input, shape index: {}]
  %s7 = inlined_call_operand.vmem [shape: f32[1,8], index: 7, kind: input, shape index: {}]
  %s8 = inlined_call_operand.vmem [shape: f32[16,8], index: 8, kind: output, shape index: {}]
  %s9 = sld [smem:[#allocation0]]
  $region77: #{tpu_custom_call.1} parent=0
    _
  %s11 = ssub.s32 1, %s9
  %s12 = scalar_select 0, %s11, %s9
  $region1: #{tpu_custom_call.1} parent=0
    #allocation2 [shape = 'u8[8192]{0}', space=vmem, size = 0x2000, scoped, tag = 'input window, operand 0']
    #allocation3 [shape = 's32[2]{0}', space=sflag, size = 0x8, scoped, tag = 'scoped memory for tpu_custom_call.1']
    #allocation4 [shape = 'u8[8192]{0}', space=vmem, size = 0x2000, scoped, tag = 'input window, operand 1']
    #allocation5 [shape = 's32[2]{0}', space=sflag, size = 0x8, scoped, tag = 'scoped memory for tpu_custom_call.1']
    #allocation6 [shape = 'u8[8192]{0}', space=vmem, size = 0x2000, scoped, tag = 'input window, operand 2, single buffered']
    %13 = vsyncpa [#allocation3], 0
    %s14 = scalar_lea.sflag [#allocation3], 1
    %15 = vsyncpa %s14, 0
    %16 = vsyncpa [#allocation5], 0
    %s17 = scalar_lea.sflag [#allocation5], 1
    %18 = vsyncpa %s17, 0
    loop: start=0, step=1, limit=4
    $region2: #{tpu_custom_call.1} parent=1 // loop_pre_header
      _
    $region3: #{tpu_custom_call.1} parent=1 // loop_header
      %s20 = sphi 0, %s24
      %p21 = scmp.ge.s32.totalorder %s20, 4
      %s30 = sphi 0, %s32
      %s33 = sphi 0, %s30
      %s34 = sphi 0, %s33
      %s50 = sphi 0, %s34
      %s56 = sphi 0, %s58
      %s59 = sphi 0, %s56
      %s60 = sphi 0, %s59
      %s76 = sphi 0, %s60
      %s80 = sphi 0, %s80
      %s82 = sphi 0, %s80
      %s83 = sphi 0, %s82
      %s97 = sphi 0, %s83
      %s101 = sphi 0, %s101
      %s103 = sphi 0, %s101
      %s104 = sphi 0, %s103
      %s118 = sphi 0, %s104
      %s122 = sphi 0, %s122
      %s124 = sphi 0, %s122
      %s125 = sphi 0, %s124
      %s139 = sphi 0, %s125
      %s143 = sphi 0, %s143
      %s145 = sphi 0, %s143
      %s146 = sphi 0, %s145
      %s160 = sphi 0, %s146
      %s164 = sphi 0, %s164
      %s166 = sphi 0, %s164
      %s167 = sphi 0, %s166
      %s181 = sphi 0, %s167
      %s185 = sphi 0, %s185
      %s187 = sphi 0, %s185
      %s188 = sphi 0, %s187
      %s202 = sphi 0, %s188
      %s208 = sphi 0, %s210
      %s211 = sphi 0, %s208
      %s212 = sphi 0, %s211
      %s228 = sphi 0, %s212
    $region4: #{tpu_custom_call.1} parent=1 // loop_header_branch
      %23 = sbr.rel (%p21) target = $region8
    $region5: #{tpu_custom_call.1} parent=1 // loop_body
      %s25 = ssub.s32 %s20, 1
      %s26 = ssub.s32 %s20, 2
      %s27 = sadd.s32 %s20, 1
      %s28 = ssub.s32 %s20, %s27
      %p29 = scmp.eq.s32.totalorder %s28, 0
      %s31 = sadd.s32 %s30, 1
      %s32 = scalar_select %p29, %s30, %s31
      %p35 = pneg %p29
      %p36 = scmp.eq.s32.totalorder %s20, 1
      %p37 = por %p35, %p36
      %p38 = scmp.ne.s32.totalorder %s30, %s33
      %p39 = scmp.eq.s32.totalorder %s20, 0
      %p40 = por %p38, %p39
      %p41 = scmp.ne.s32.totalorder %s30, %s33
      %p42 = scmp.eq.s32.totalorder %s25, 1
      %p43 = por %p41, %p42
      %p44 = scmp.ne.s32.totalorder %s33, %s34
      %p45 = scmp.eq.s32.totalorder %s25, 0
      %p46 = por %p44, %p45
      %p47 = scmp.ne.s32.totalorder %s33, %s34
      %p48 = scmp.eq.s32.totalorder %s26, 1
      %p49 = por %p47, %p48
      %p51 = scmp.ne.s32.totalorder %s34, %s50
      %p52 = scmp.eq.s32.totalorder %s26, 0
      %p53 = por %p51, %p52
      %s54 = ssub.s32 %s20, %s27
      %p55 = scmp.eq.s32.totalorder %s54, 0
      %s57 = sadd.s32 %s56, 1
      %s58 = scalar_select %p55, %s56, %s57
      %p61 = pneg %p55
      %p62 = scmp.eq.s32.totalorder %s20, 1
      %p63 = por %p61, %p62
      %p64 = scmp.ne.s32.totalorder %s56, %s59
      %p65 = scmp.eq.s32.totalorder %s20, 0
      %p66 = por %p64, %p65
      %p67 = scmp.ne.s32.totalorder %s56, %s59
      %p68 = scmp.eq.s32.totalorder %s25, 1
      %p69 = por %p67, %p68
      %p70 = scmp.ne.s32.totalorder %s59, %s60
      %p71 = scmp.eq.s32.totalorder %s25, 0
      %p72 = por %p70, %p71
      %p73 = scmp.ne.s32.totalorder %s59, %s60
      %p74 = scmp.eq.s32.totalorder %s26, 1
      %p75 = por %p73, %p74
      %p77 = scmp.ne.s32.totalorder %s60, %s76
      %p78 = scmp.eq.s32.totalorder %s26, 0
      %p79 = por %p77, %p78
      %s81 = sadd.s32 %s80, 1
      %p84 = scmp.eq.s32.totalorder %s20, 1
      %p85 = scmp.ne.s32.totalorder %s80, %s82
      %p86 = scmp.eq.s32.totalorder %s20, 0
      %p87 = por %p85, %p86
      %p88 = scmp.ne.s32.totalorder %s80, %s82
      %p89 = scmp.eq.s32.totalorder %s25, 1
      %p90 = por %p88, %p89
      %p91 = scmp.ne.s32.totalorder %s82, %s83
      %p92 = scmp.eq.s32.totalorder %s25, 0
      %p93 = por %p91, %p92
      %p94 = scmp.ne.s32.totalorder %s82, %s83
      %p95 = scmp.eq.s32.totalorder %s26, 1
      %p96 = por %p94, %p95
      %p98 = scmp.ne.s32.totalorder %s83, %s97
      %p99 = scmp.eq.s32.totalorder %s26, 0
      %p100 = por %p98, %p99
      %s102 = sadd.s32 %s101, 1
      %p105 = scmp.eq.s32.totalorder %s20, 1
      %p106 = scmp.ne.s32.totalorder %s101, %s103
      %p107 = scmp.eq.s32.totalorder %s20, 0
      %p108 = por %p106, %p107
      %p109 = scmp.ne.s32.totalorder %s101, %s103
      %p110 = scmp.eq.s32.totalorder %s25, 1
      %p111 = por %p109, %p110
      %p112 = scmp.ne.s32.totalorder %s103, %s104
      %p113 = scmp.eq.s32.totalorder %s25, 0
      %p114 = por %p112, %p113
      %p115 = scmp.ne.s32.totalorder %s103, %s104
      %p116 = scmp.eq.s32.totalorder %s26, 1
      %p117 = por %p115, %p116
      %p119 = scmp.ne.s32.totalorder %s104, %s118
      %p120 = scmp.eq.s32.totalorder %s26, 0
      %p121 = por %p119, %p120
      %s123 = sadd.s32 %s122, 1
      %p126 = scmp.eq.s32.totalorder %s20, 1
      %p127 = scmp.ne.s32.totalorder %s122, %s124
      %p128 = scmp.eq.s32.totalorder %s20, 0
      %p129 = por %p127, %p128
      %p130 = scmp.ne.s32.totalorder %s122, %s124
      %p131 = scmp.eq.s32.totalorder %s25, 1
      %p132 = por %p130, %p131
      %p133 = scmp.ne.s32.totalorder %s124, %s125
      %p134 = scmp.eq.s32.totalorder %s25, 0
      %p135 = por %p133, %p134
      %p136 = scmp.ne.s32.totalorder %s124, %s125
      %p137 = scmp.eq.s32.totalorder %s26, 1
      %p138 = por %p136, %p137
      %p140 = scmp.ne.s32.totalorder %s125, %s139
      %p141 = scmp.eq.s32.totalorder %s26, 0
      %p142 = por %p140, %p141
      %s144 = sadd.s32 %s143, 1
      %p147 = scmp.eq.s32.totalorder %s20, 1
      %p148 = scmp.ne.s32.totalorder %s143, %s145
      %p149 = scmp.eq.s32.totalorder %s20, 0
      %p150 = por %p148, %p149
      %p151 = scmp.ne.s32.totalorder %s143, %s145
      %p152 = scmp.eq.s32.totalorder %s25, 1
      %p153 = por %p151, %p152
      %p154 = scmp.ne.s32.totalorder %s145, %s146
      %p155 = scmp.eq.s32.totalorder %s25, 0
      %p156 = por %p154, %p155
      %p157 = scmp.ne.s32.totalorder %s145, %s146
      %p158 = scmp.eq.s32.totalorder %s26, 1
      %p159 = por %p157, %p158
      %p161 = scmp.ne.s32.totalorder %s146, %s160
      %p162 = scmp.eq.s32.totalorder %s26, 0
      %p163 = por %p161, %p162
      %s165 = sadd.s32 %s164, 1
      %p168 = scmp.eq.s32.totalorder %s20, 1
      %p169 = scmp.ne.s32.totalorder %s164, %s166
      %p170 = scmp.eq.s32.totalorder %s20, 0
      %p171 = por %p169, %p170
      %p172 = scmp.ne.s32.totalorder %s164, %s166
      %p173 = scmp.eq.s32.totalorder %s25, 1
      %p174 = por %p172, %p173
      %p175 = scmp.ne.s32.totalorder %s166, %s167
      %p176 = scmp.eq.s32.totalorder %s25, 0
      %p177 = por %p175, %p176
      %p178 = scmp.ne.s32.totalorder %s166, %s167
      %p179 = scmp.eq.s32.totalorder %s26, 1
      %p180 = por %p178, %p179
      %p182 = scmp.ne.s32.totalorder %s167, %s181
      %p183 = scmp.eq.s32.totalorder %s26, 0
      %p184 = por %p182, %p183
      %s186 = sadd.s32 %s185, 1
      %p189 = scmp.eq.s32.totalorder %s20, 1
      %p190 = scmp.ne.s32.totalorder %s185, %s187
      %p191 = scmp.eq.s32.totalorder %s20, 0
      %p192 = por %p190, %p191
      %p193 = scmp.ne.s32.totalorder %s185, %s187
      %p194 = scmp.eq.s32.totalorder %s25, 1
      %p195 = por %p193, %p194
      %p196 = scmp.ne.s32.totalorder %s187, %s188
      %p197 = scmp.eq.s32.totalorder %s25, 0
      %p198 = por %p196, %p197
      %p199 = scmp.ne.s32.totalorder %s187, %s188
      %p200 = scmp.eq.s32.totalorder %s26, 1
      %p201 = por %p199, %p200
      %p203 = scmp.ne.s32.totalorder %s188, %s202
      %p204 = scmp.eq.s32.totalorder %s26, 0
      %p205 = por %p203, %p204
      %s206 = ssub.s32 %s20, %s27
      %p207 = scmp.eq.s32.totalorder %s206, 0
      %s209 = sadd.s32 %s208, 1
      %s210 = scalar_select %p207, %s208, %s209
      %p213 = pneg %p207
      %p214 = scmp.eq.s32.totalorder %s20, 1
      %p215 = por %p213, %p214
      %p216 = scmp.ne.s32.totalorder %s208, %s211
      %p217 = scmp.eq.s32.totalorder %s20, 0
      %p218 = por %p216, %p217
      %p219 = scmp.ne.s32.totalorder %s208, %s211
      %p220 = scmp.eq.s32.totalorder %s25, 1
      %p221 = por %p219, %p220
      %p222 = scmp.ne.s32.totalorder %s211, %s212
      %p223 = scmp.eq.s32.totalorder %s25, 0
      %p224 = por %p222, %p223
      %p225 = scmp.ne.s32.totalorder %s211, %s212
      %p226 = scmp.eq.s32.totalorder %s26, 1
      %p227 = por %p225, %p226
      %p229 = scmp.ne.s32.totalorder %s212, %s228
      %p230 = scmp.eq.s32.totalorder %s26, 0
      %p231 = por %p229, %p230
      %p232 = scmp.le.s32.totalorder 1, %s20
      %p233 = scmp.lt.s32.totalorder %s20, 3
      %p234 = pnand %p232, %p233
      %p235 = pneg %p234
      // Predicated region
      $region9: #{tpu_custom_call.1} parent=5 // pred_check
        _
      $region10: #{tpu_custom_call.1} parent=5 // pred_check_branch
        %237 = sbr.rel (%p234) target = $region12
      $region11: #{tpu_custom_call.1} parent=5 // pred_region
        %s238 = ssub.s32 %s20, 1
        // Predicated region
        $region13: #{tpu_custom_call.1} parent=11 // pred_check
          %p239 = pneg %p93
        $region14: #{tpu_custom_call.1} parent=11 // pred_check_branch
          %241 = sbr.rel (%p239) target = $region16
        $region15: #{tpu_custom_call.1} parent=11 // pred_region
          %s243 = ssub.s32 256, 256
          %244 = vsyncadd [#allocation5], %s243
          %s245 = sshll.u32 [#allocation6], 4
          %s246 = int_to_ptr.vmem [resolvable:$true] %s245
          %251 = dma.hbm_to_vmem [thread:$0]  %s2, 256, %s246, [#allocation5], 128, 128, 8
        $region16: #{tpu_custom_call.1} parent=11 // pred_fallthru
          _
        // Predicated region
        $region17: #{tpu_custom_call.1} parent=11 // pred_check
          %p252 = pneg %p114
        $region18: #{tpu_custom_call.1} parent=11 // pred_check_branch
          %254 = sbr.rel (%p252) target = $region20
        $region19: #{tpu_custom_call.1} parent=11 // pred_region
          _
        $region20: #{tpu_custom_call.1} parent=11 // pred_fallthru
          _
        // Predicated region
        $region21: #{tpu_custom_call.1} parent=11 // pred_check
          %p255 = pneg %p135
        $region22: #{tpu_custom_call.1} parent=11 // pred_check_branch
          %257 = sbr.rel (%p255) target = $region24
        $region23: #{tpu_custom_call.1} parent=11 // pred_region
          _
        $region24: #{tpu_custom_call.1} parent=11 // pred_fallthru
          _
        // Predicated region
        $region25: #{tpu_custom_call.1} parent=11 // pred_check
          %p258 = pneg %p156
        $region26: #{tpu_custom_call.1} parent=11 // pred_check_branch
          %260 = sbr.rel (%p258) target = $region28
        $region27: #{tpu_custom_call.1} parent=11 // pred_region
          _
        $region28: #{tpu_custom_call.1} parent=11 // pred_fallthru
          _
        // Predicated region
        $region29: #{tpu_custom_call.1} parent=11 // pred_check
          %p261 = pneg %p177
        $region30: #{tpu_custom_call.1} parent=11 // pred_check_branch
          %263 = sbr.rel (%p261) target = $region32
        $region31: #{tpu_custom_call.1} parent=11 // pred_region
          _
        $region32: #{tpu_custom_call.1} parent=11 // pred_fallthru
          _
        // Predicated region
        $region33: #{tpu_custom_call.1} parent=11 // pred_check
          %p264 = pneg %p198
        $region34: #{tpu_custom_call.1} parent=11 // pred_check_branch
          %266 = sbr.rel (%p264) target = $region36
        $region35: #{tpu_custom_call.1} parent=11 // pred_region
          _
        $region36: #{tpu_custom_call.1} parent=11 // pred_fallthru
          _
      $region12: #{tpu_custom_call.1} parent=5 // pred_fallthru
        _
      %p267 = scmp.lt.s32.totalorder %s20, 2
      // Predicated region
      $region37: #{tpu_custom_call.1} parent=5 // pred_check
        %p268 = pneg %p267
      $region38: #{tpu_custom_call.1} parent=5 // pred_check_branch
        %270 = sbr.rel (%p268) target = $region40
      $region39: #{tpu_custom_call.1} parent=5 // pred_region
        // Predicated region
        $region41: #{tpu_custom_call.1} parent=39 // pred_check
          %p271 = pneg %p40
        $region42: #{tpu_custom_call.1} parent=39 // pred_check_branch
          %273 = sbr.rel (%p271) target = $region44
        $region43: #{tpu_custom_call.1} parent=39 // pred_region
          %s274 = sand.u32 %s30, 1
          %s275 = scalar_lea.sflag [#allocation3], %s274
          %s276 = sand.u32 %s30, 1
          %s277 = smul.addr %s276, 8
          %s278 = scalar_lea.vmem [#allocation2], %s277
          %s280 = ssub.s32 128, 128
          %281 = vsyncadd %s275, %s280
          %s282 = smul.addr %s20, 128
          %s283 = scalar_lea.hbm %s0, %s282
          %s285 = sshll.u32 %s278, 4
          %s286 = int_to_ptr.vmem [resolvable:$true] %s285
          %288 = dma.hbm_to_vmem [thread:$0]  %s283, 128, %s286, %s275
        $region44: #{tpu_custom_call.1} parent=39 // pred_fallthru
          _
        // Predicated region
        $region45: #{tpu_custom_call.1} parent=39 // pred_check
          %p289 = pneg %p66
        $region46: #{tpu_custom_call.1} parent=39 // pred_check_branch
          %291 = sbr.rel (%p289) target = $region48
        $region47: #{tpu_custom_call.1} parent=39 // pred_region
          %s292 = sand.u32 %s20, 1
          %s293 = scalar_lea.sflag [#allocation5], %s292
          %s294 = sand.u32 %s56, 1
          %s295 = smul.addr %s294, 8
          %s296 = scalar_lea.vmem [#allocation4], %s295
          %s298 = ssub.s32 128, 128
          %299 = vsyncadd %s293, %s298
          %s300 = smul.addr %s20, 128
          %s301 = scalar_lea.hbm %s1, %s300
          %s303 = sshll.u32 %s296, 4
          %s304 = int_to_ptr.vmem [resolvable:$true] %s303
          %306 = dma.hbm_to_vmem [thread:$0]  %s301, 128, %s304, %s293
        $region48: #{tpu_custom_call.1} parent=39 // pred_fallthru
          _
      $region40: #{tpu_custom_call.1} parent=5 // pred_fallthru
        _
      %p307 = scmp.le.s32.totalorder 1, %s20
      %p308 = scmp.lt.s32.totalorder %s20, 3
      %p309 = pnand %p307, %p308
      %p310 = pneg %p309
      // Predicated region
      $region49: #{tpu_custom_call.1} parent=5 // pred_check
        _
      $region50: #{tpu_custom_call.1} parent=5 // pred_check_branch
        %312 = sbr.rel (%p309) target = $region52
      $region51: #{tpu_custom_call.1} parent=5 // pred_region
        %s313 = ssub.s32 %s20, 1
        %s314 = sand.u32 %s33, 1
        %s315 = scalar_lea.sflag [#allocation3], %s314
        %s316 = sand.u32 %s33, 1
        %s317 = smul.addr %s316, 8
        %s318 = scalar_lea.vmem [#allocation2], %s317
        // Predicated region
        $region53: #{tpu_custom_call.1} parent=51 // pred_check
          %p319 = pneg %p46
        $region54: #{tpu_custom_call.1} parent=51 // pred_check_branch
          %321 = sbr.rel (%p319) target = $region56
        $region55: #{tpu_custom_call.1} parent=51 // pred_region
          %322 = dma.done %s315, 128
        $region56: #{tpu_custom_call.1} parent=51 // pred_fallthru
          _
        %s323 = sand.u32 %s25, 1
        %s324 = scalar_lea.sflag [#allocation5], %s323
        %s325 = sand.u32 %s59, 1
        %s326 = smul.addr %s325, 8
        %s327 = scalar_lea.vmem [#allocation4], %s326
        // Predicated region
        $region57: #{tpu_custom_call.1} parent=51 // pred_check
          %p328 = pneg %p72
        $region58: #{tpu_custom_call.1} parent=51 // pred_check_branch
          %330 = sbr.rel (%p328) target = $region60
        $region59: #{tpu_custom_call.1} parent=51 // pred_region
          %331 = dma.done %s324, 128
        $region60: #{tpu_custom_call.1} parent=51 // pred_fallthru
          _
        // Predicated region
        $region61: #{tpu_custom_call.1} parent=51 // pred_check
          %p332 = pneg %p93
        $region62: #{tpu_custom_call.1} parent=51 // pred_check_branch
          %334 = sbr.rel (%p332) target = $region64
        $region63: #{tpu_custom_call.1} parent=51 // pred_region
          %335 = dma.done [#allocation5], 256
        $region64: #{tpu_custom_call.1} parent=51 // pred_fallthru
          _
        %s336 = sand.u32 %s33, 1
        %s337 = scalar_lea.sflag [#allocation3], %s336
        %s338 = sand.u32 %s33, 1
        %s339 = smul.addr %s338, 8
        %s340 = scalar_lea.vmem [#allocation2], %s339
        %p341 = pneg %p46
        %p342 = pneg %p43
        %s343 = sand.u32 %s25, 1
        %s344 = scalar_lea.sflag [#allocation5], %s343
        %s345 = sand.u32 %s59, 1
        %s346 = smul.addr %s345, 8
        %s347 = scalar_lea.vmem [#allocation4], %s346
        %p348 = pneg %p72
        %p349 = pneg %p69
        %p350 = pneg %p93
        %p351 = pneg %p90
        %p352 = pneg %p114
        %p353 = pneg %p111
        %p354 = pneg %p135
        %p355 = pneg %p132
        %p356 = pneg %p156
        %p357 = pneg %p153
        %p358 = pneg %p177
        %p359 = pneg %p174
        %p360 = pneg %p198
        %p361 = pneg %p195
        %p362 = pneg %p224
        %p363 = pneg %p221
        %p364 = scmp.lt.s32.totalorder %s25, 1
        %s365 = scalar_select %p364, %s25, 1
        %s366 = smul.addr %s365, 8
        %s367 = scalar_lea.vmem %s8, %s366
        %p368 = scmp.lt.s32.totalorder %s25, 1
        %s369 = scalar_select %p368, %s25, 1
        %s370 = smul.addr %s369, 8
        %s371 = scalar_lea.vmem %s8, %s370
        %v372 = vld [vmem:[%s318] sm:$0xff]
        %v373 = vld [vmem:[#allocation6] sm:$0xff]
        %v374 = vld [vmem:[#allocation6 + $0x8] sm:$0xff]
        %v375 = vld [vmem:[%s3] sm:$0x1]
        %v377 = vlaneseq
        %v378 = vshrl.u32 %v377, 7
        %v379 = vsub.s32 0, %v378
        %v380 = vrot.slane %v375, %v379
        %vm382 = vcmask 130048
        %v384 = vsel %vm382, %v372, 0
        %386 = vmatprep.subr.mxu0 0.0
        %387 = vmatpush1.msra.mxu0 0.0
        %388 = vmatprep.subr.mxu0 0.0
        %389 = vmatpush1.msra.mxu0 0.0
        %390 = vmatprep.subr.mxu0 0.0
        %391 = vmatpush1.msra.mxu0 0.0
        %392 = vmatprep.subr.mxu0 0.0
        %393 = vmatpush1.msra.mxu0 0.0
        %394 = vmatprep.subr.mxu0 0.0
        %395 = vmatpush1.msra.mxu0 0.0
        %396 = vmatprep.subr.mxu0 0.0
        %397 = vmatpush1.msra.mxu0 0.0
        %398 = vmatprep.subr.mxu0 0.0
        %399 = vmatpush1.msra.mxu0 0.0
        %400 = vmatprep.subr.mxu0 0.0
        %401 = vmatpush1.msra.mxu0 0.0
        %402 = vmatprep.subr.mxu0 0.0
        %403 = vmatpush1.msra.mxu0 0.0
        %404 = vmatprep.subr.mxu0 0.0
        %405 = vmatpush1.msra.mxu0 0.0
        %406 = vmatprep.subr.mxu0 0.0
        %407 = vmatpush1.msra.mxu0 0.0
        %408 = vmatprep.subr.mxu0 0.0
        %409 = vmatpush1.msra.mxu0 0.0
        %410 = vmatprep.subr.mxu0 0.0
        %411 = vmatpush1.msra.mxu0 0.0
        %412 = vmatprep.subr.mxu0 0.0
        %413 = vmatpush1.msra.mxu0 0.0
        %414 = vmatprep.subr.mxu0 0.0
        %415 = vmatpush1.msra.mxu0 %v374
        %416 = vmatprep.subr.mxu0 0.0
        %417 = vmatpush1.msra.mxu0 %v373
        %418 = vmatprep.subr.mxu0 0.0
        %419 = vmatpush2.msra.mxu0 0.0
        %420 = vmatprep.subr.mxu0 0.0
        %421 = vmatpush2.msra.mxu0 0.0
        %422 = vmatprep.subr.mxu0 0.0
        %423 = vmatpush2.msra.mxu0 0.0
        %424 = vmatprep.subr.mxu0 0.0
        %425 = vmatpush2.msra.mxu0 0.0
        %426 = vmatprep.subr.mxu0 0.0
        %427 = vmatpush2.msra.mxu0 0.0
        %428 = vmatprep.subr.mxu0 0.0
        %429 = vmatpush2.msra.mxu0 0.0
        %430 = vmatprep.subr.mxu0 0.0
        %431 = vmatpush2.msra.mxu0 0.0
        %432 = vmatprep.subr.mxu0 0.0
        %433 = vmatpush2.msra.mxu0 0.0
        %434 = vmatprep.subr.mxu0 0.0
        %435 = vmatpush2.msra.mxu0 0.0
        %436 = vmatprep.subr.mxu0 0.0
        %437 = vmatpush2.msra.mxu0 0.0
        %438 = vmatprep.subr.mxu0 0.0
        %439 = vmatpush2.msra.mxu0 0.0
        %440 = vmatprep.subr.mxu0 0.0
        %441 = vmatpush2.msra.mxu0 0.0
        %442 = vmatprep.subr.mxu0 0.0
        %443 = vmatpush2.msra.mxu0 0.0
        %444 = vmatprep.subr.mxu0 0.0
        %445 = vmatpush2.msra.mxu0 0.0
        %446 = vmatprep.subr.mxu0 0.0
        %447 = vmatpush2.msra.mxu0 0.0
        %448 = vmatprep.subr.mxu0 0.0
        %449 = vmatpush2.msra.mxu0 0.0
        %450 = vmatprep.mubr.f32.mxu0 0.0
        %451 = vmatmul.mubr.f32.gmra.mxu0 %v384
        %v452 = vpop.f32.mrf.mxu0
        %v453 = vadd.f32 %v380, %v452
        %v454 = vpop.f32.mrf.mxu0
        %455 = vdwg.mxu0
        %v456 = vmax.f32 %v453, 0.0
        %v457 = vld [vmem:[%s327] sm:$0xff]
        %vm458 = vcmp.ge.u32.totalorder %v457, 1073741824
        %v459 = vmul.f32 %v456, 1.3333334
        %v460 = vsel %vm458, %v459, 0.0
        %v461 = vld [vmem:[%s4] sm:$0xff]
        %v462 = vld [vmem:[%s4 + $0x8] sm:$0xff]
        %v463 = vld [vmem:[%s4 + $0x10] sm:$0xff]
        %v464 = vld [vmem:[%s4 + $0x18] sm:$0xff]
        %v465 = vld [vmem:[%s4 + $0x20] sm:$0xff]
        %v466 = vld [vmem:[%s4 + $0x28] sm:$0xff]
        %v467 = vld [vmem:[%s4 + $0x30] sm:$0xff]
        %v468 = vld [vmem:[%s4 + $0x38] sm:$0xff]
        %v469 = vld [vmem:[%s4 + $0x40] sm:$0xff]
        %v470 = vld [vmem:[%s4 + $0x48] sm:$0xff]
        %v471 = vld [vmem:[%s4 + $0x50] sm:$0xff]
        %v472 = vld [vmem:[%s4 + $0x58] sm:$0xff]
        %v473 = vld [vmem:[%s4 + $0x60] sm:$0xff]
        %v474 = vld [vmem:[%s4 + $0x68] sm:$0xff]
        %v475 = vld [vmem:[%s4 + $0x70] sm:$0xff]
        %v476 = vld [vmem:[%s4 + $0x78] sm:$0xff]
        %v477 = vld [vmem:[%s5] sm:$0x1]
        %v479 = vlaneseq
        %v480 = vshrl.u32 %v479, 7
        %v481 = vsub.s32 0, %v480
        %v482 = vrot.slane %v477, %v481
        %484 = vmatprep.subr.mxu0 0.0
        %485 = vmatpush1.msra.mxu0 %v476
        %486 = vmatprep.subr.mxu0 0.0
        %487 = vmatpush1.msra.mxu0 %v475
        %488 = vmatprep.subr.mxu0 0.0
        %489 = vmatpush1.msra.mxu0 %v474
        %490 = vmatprep.subr.mxu0 0.0
        %491 = vmatpush1.msra.mxu0 %v473
        %492 = vmatprep.subr.mxu0 0.0
        %493 = vmatpush1.msra.mxu0 %v472
        %494 = vmatprep.subr.mxu0 0.0
        %495 = vmatpush1.msra.mxu0 %v471
        %496 = vmatprep.subr.mxu0 0.0
        %497 = vmatpush1.msra.mxu0 %v470
        %498 = vmatprep.subr.mxu0 0.0
        %499 = vmatpush1.msra.mxu0 %v469
        %500 = vmatprep.subr.mxu0 0.0
        %501 = vmatpush1.msra.mxu0 %v468
        %502 = vmatprep.subr.mxu0 0.0
        %503 = vmatpush1.msra.mxu0 %v467
        %504 = vmatprep.subr.mxu0 0.0
        %505 = vmatpush1.msra.mxu0 %v466
        %506 = vmatprep.subr.mxu0 0.0
        %507 = vmatpush1.msra.mxu0 %v465
        %508 = vmatprep.subr.mxu0 0.0
        %509 = vmatpush1.msra.mxu0 %v464
        %510 = vmatprep.subr.mxu0 0.0
        %511 = vmatpush1.msra.mxu0 %v463
        %512 = vmatprep.subr.mxu0 0.0
        %513 = vmatpush1.msra.mxu0 %v462
        %514 = vmatprep.subr.mxu0 0.0
        %515 = vmatpush1.msra.mxu0 %v461
        %516 = vmatprep.subr.mxu0 0.0
        %517 = vmatpush2.msra.mxu0 0.0
        %518 = vmatprep.subr.mxu0 0.0
        %519 = vmatpush2.msra.mxu0 0.0
        %520 = vmatprep.subr.mxu0 0.0
        %521 = vmatpush2.msra.mxu0 0.0
        %522 = vmatprep.subr.mxu0 0.0
        %523 = vmatpush2.msra.mxu0 0.0
        %524 = vmatprep.subr.mxu0 0.0
        %525 = vmatpush2.msra.mxu0 0.0
        %526 = vmatprep.subr.mxu0 0.0
        %527 = vmatpush2.msra.mxu0 0.0
        %528 = vmatprep.subr.mxu0 0.0
        %529 = vmatpush2.msra.mxu0 0.0
        %530 = vmatprep.subr.mxu0 0.0
        %531 = vmatpush2.msra.mxu0 0.0
        %532 = vmatprep.subr.mxu0 0.0
        %533 = vmatpush2.msra.mxu0 0.0
        %534 = vmatprep.subr.mxu0 0.0
        %535 = vmatpush2.msra.mxu0 0.0
        %536 = vmatprep.subr.mxu0 0.0
        %537 = vmatpush2.msra.mxu0 0.0
        %538 = vmatprep.subr.mxu0 0.0
        %539 = vmatpush2.msra.mxu0 0.0
        %540 = vmatprep.subr.mxu0 0.0
        %541 = vmatpush2.msra.mxu0 0.0
        %542 = vmatprep.subr.mxu0 0.0
        %543 = vmatpush2.msra.mxu0 0.0
        %544 = vmatprep.subr.mxu0 0.0
        %545 = vmatpush2.msra.mxu0 0.0
        %546 = vmatprep.subr.mxu0 0.0
        %547 = vmatpush2.msra.mxu0 0.0
        %548 = vmatprep.mubr.f32.mxu0 0.0
        %549 = vmatmul.mubr.f32.gmra.mxu0 %v460
        %v550 = vpop.f32.mrf.mxu0
        %v551 = vadd.f32 %v482, %v550
        %v552 = vpop.f32.mrf.mxu0
        %553 = vdwg.mxu0
        %v554 = vmax.f32 %v551, 0.0
        %v555 = vld [vmem:[%s6] sm:$0xff]
        %v556 = vld [vmem:[%s6 + $0x8] sm:$0xff]
        %v557 = vld [vmem:[%s6 + $0x10] sm:$0xff]
        %v558 = vld [vmem:[%s6 + $0x18] sm:$0xff]
        %v559 = vld [vmem:[%s6 + $0x20] sm:$0xff]
        %v560 = vld [vmem:[%s6 + $0x28] sm:$0xff]
        %v561 = vld [vmem:[%s6 + $0x30] sm:$0xff]
        %v562 = vld [vmem:[%s6 + $0x38] sm:$0xff]
        %v563 = vld [vmem:[%s6 + $0x40] sm:$0xff]
        %v564 = vld [vmem:[%s6 + $0x48] sm:$0xff]
        %v565 = vld [vmem:[%s6 + $0x50] sm:$0xff]
        %v566 = vld [vmem:[%s6 + $0x58] sm:$0xff]
        %v567 = vld [vmem:[%s6 + $0x60] sm:$0xff]
        %v568 = vld [vmem:[%s6 + $0x68] sm:$0xff]
        %v569 = vld [vmem:[%s6 + $0x70] sm:$0xff]
        %v570 = vld [vmem:[%s6 + $0x78] sm:$0xff]
        %v571 = vld [vmem:[%s7] sm:$0x1]
        %v573 = vlaneseq
        %v574 = vshrl.u32 %v573, 7
        %v575 = vsub.s32 0, %v574
        %v576 = vrot.slane %v571, %v575
        %578 = vmatprep.subr.mxu0 0.0
        %579 = vmatpush1.msra.mxu0 %v570
        %580 = vmatprep.subr.mxu0 0.0
        %581 = vmatpush1.msra.mxu0 %v569
        %582 = vmatprep.subr.mxu0 0.0
        %583 = vmatpush1.msra.mxu0 %v568
        %584 = vmatprep.subr.mxu0 0.0
        %585 = vmatpush1.msra.mxu0 %v567
        %586 = vmatprep.subr.mxu0 0.0
        %587 = vmatpush1.msra.mxu0 %v566
        %588 = vmatprep.subr.mxu0 0.0
        %589 = vmatpush1.msra.mxu0 %v565
        %590 = vmatprep.subr.mxu0 0.0
        %591 = vmatpush1.msra.mxu0 %v564
        %592 = vmatprep.subr.mxu0 0.0
        %593 = vmatpush1.msra.mxu0 %v563
        %594 = vmatprep.subr.mxu0 0.0
        %595 = vmatpush1.msra.mxu0 %v562
        %596 = vmatprep.subr.mxu0 0.0
        %597 = vmatpush1.msra.mxu0 %v561
        %598 = vmatprep.subr.mxu0 0.0
        %599 = vmatpush1.msra.mxu0 %v560
        %600 = vmatprep.subr.mxu0 0.0
        %601 = vmatpush1.msra.mxu0 %v559
        %602 = vmatprep.subr.mxu0 0.0
        %603 = vmatpush1.msra.mxu0 %v558
        %604 = vmatprep.subr.mxu0 0.0
        %605 = vmatpush1.msra.mxu0 %v557
        %606 = vmatprep.subr.mxu0 0.0
        %607 = vmatpush1.msra.mxu0 %v556
        %608 = vmatprep.subr.mxu0 0.0
        %609 = vmatpush1.msra.mxu0 %v555
        %610 = vmatprep.subr.mxu0 0.0
        %611 = vmatpush2.msra.mxu0 0.0
        %612 = vmatprep.subr.mxu0 0.0
        %613 = vmatpush2.msra.mxu0 0.0
        %614 = vmatprep.subr.mxu0 0.0
        %615 = vmatpush2.msra.mxu0 0.0
        %616 = vmatprep.subr.mxu0 0.0
        %617 = vmatpush2.msra.mxu0 0.0
        %618 = vmatprep.subr.mxu0 0.0
        %619 = vmatpush2.msra.mxu0 0.0
        %620 = vmatprep.subr.mxu0 0.0
        %621 = vmatpush2.msra.mxu0 0.0
        %622 = vmatprep.subr.mxu0 0.0
        %623 = vmatpush2.msra.mxu0 0.0
        %624 = vmatprep.subr.mxu0 0.0
        %625 = vmatpush2.msra.mxu0 0.0
        %626 = vmatprep.subr.mxu0 0.0
        %627 = vmatpush2.msra.mxu0 0.0
        %628 = vmatprep.subr.mxu0 0.0
        %629 = vmatpush2.msra.mxu0 0.0
        %630 = vmatprep.subr.mxu0 0.0
        %631 = vmatpush2.msra.mxu0 0.0
        %632 = vmatprep.subr.mxu0 0.0
        %633 = vmatpush2.msra.mxu0 0.0
        %634 = vmatprep.subr.mxu0 0.0
        %635 = vmatpush2.msra.mxu0 0.0
        %636 = vmatprep.subr.mxu0 0.0
        %637 = vmatpush2.msra.mxu0 0.0
        %638 = vmatprep.subr.mxu0 0.0
        %639 = vmatpush2.msra.mxu0 0.0
        %640 = vmatprep.subr.mxu0 0.0
        %641 = vmatpush2.msra.mxu0 0.0
        %642 = vmatprep.mubr.f32.mxu0 0.0
        %643 = vmatmul.mubr.f32.gmra.mxu0 %v554
        %v644 = vpop.f32.mrf.mxu0
        %v645 = vadd.f32 %v576, %v644
        %v646 = vpop.f32.mrf.mxu0
        %647 = vdwg.mxu0
        %vm648 = vcmask 64512
        %649 = vst.msk [vmem:[%s371] sm:$0xff] %vm648, %v645
        %p650 = scmp.lt.s32.totalorder %s25, 1
        %s651 = scalar_select %p650, %s25, 1
        %s652 = smul.addr %s651, 8
        %s653 = scalar_lea.vmem %s8, %s652
        // Predicated region
        $region65: #{tpu_custom_call.1} parent=51 // pred_check
          %p654 = pneg %p221
        $region66: #{tpu_custom_call.1} parent=51 // pred_check_branch
          %656 = sbr.rel (%p654) target = $region68
        $region67: #{tpu_custom_call.1} parent=51 // pred_region
          _
        $region68: #{tpu_custom_call.1} parent=51 // pred_fallthru
          _
      $region52: #{tpu_custom_call.1} parent=5 // pred_fallthru
        _
      %p657 = scmp.le.s32.totalorder 2, %s20
      // Predicated region
      $region69: #{tpu_custom_call.1} parent=5 // pred_check
        %p658 = pneg %p657
      $region70: #{tpu_custom_call.1} parent=5 // pred_check_branch
        %660 = sbr.rel (%p658) target = $region72
      $region71: #{tpu_custom_call.1} parent=5 // pred_region
        %s661 = ssub.s32 %s20, 2
        // Predicated region
        $region73: #{tpu_custom_call.1} parent=71 // pred_check
          %p662 = pneg %p227
        $region74: #{tpu_custom_call.1} parent=71 // pred_check_branch
          %664 = sbr.rel (%p662) target = $region76
        $region75: #{tpu_custom_call.1} parent=71 // pred_region
          %p665 = scmp.lt.s32.totalorder %s26, 1
          %s666 = scalar_select %p665, %s26, 1
          %s667 = smul.addr %s666, 8
          %s668 = scalar_lea.vmem %s8, %s667
        $region76: #{tpu_custom_call.1} parent=71 // pred_fallthru
          _
      $region72: #{tpu_custom_call.1} parent=5 // pred_fallthru
        _
    $region6: #{tpu_custom_call.1} parent=1 // loop_footer
      %s24 = sadd.s32 1, %s20
    $region7: #{tpu_custom_call.1} parent=1 // loop_footer_branch
      %19 = sbr.rel target = $region3
    $region8: #{tpu_custom_call.1} parent=1 // loop_exit
      _
    %669 = vsyncpa [#allocation3], 1
    %s670 = scalar_lea.sflag [#allocation3], 1
    %671 = vsyncpa %s670, 1
    %672 = vsyncpa [#allocation5], 1
    %s673 = scalar_lea.sflag [#allocation5], 1
    %674 = vsyncpa %s673, 1

</llo_original>
